<compile_context>
chip_gen: v7x
topology: tpu7x:2x2x1
jax: 0.10.0
libtpu: 0.0.40
codegen_flags: <defaults>
</compile_context>

<pallas_src>
import functools
import math

import numpy as np
import jax
import jax.numpy as jnp
from jax import lax
from jax.experimental import pallas as pl
from jax.experimental.pallas import tpu as pltpu

_K = 8  # candidate etas per multisection step (one per sublane row)


def _dvp_kernel(v_ref, loss_ref, prob_ref, *, m, lmbda, gamma, tol, max_iter,
                max_expand):
    _, L = v_ref.shape
    K = _K
    v0 = v_ref[...].astype(jnp.float32)                 # (1, L), zero padded
    col = lax.broadcasted_iota(jnp.int32, (1, L), 1)
    mask = col < m
    m_f = jnp.float32(m)
    neg_inf = jnp.float32(-jnp.inf)
    pos_inf = jnp.float32(jnp.inf)

    # ---- prologue: four independent reductions (overlap in the XLUs) ----
    vmax = jnp.max(jnp.where(mask, v0, neg_inf))
    vmin = jnp.min(jnp.where(mask, v0, pos_inf))
    vsum = jnp.sum(v0)                                   # padding is exactly 0
    vsumsq = jnp.sum(v0 * v0)
    vmean = vsum / m_f
    # torch.var() is unbiased (ddof=1); one-pass formula keeps the four
    # reductions independent.
    var = (vsumsq - m_f * vmean * vmean) / (m_f - 1.0)

    expnt = 2 * gamma - 1
    if float(expnt).is_integer():
        expnt = int(expnt)
    size = jnp.float32(lmbda * lmbda) * var ** expnt

    # Branch predicates, same order / semantics as findQ.
    cond_uniform = (vmax - vmin) / vmax <= 1e-05
    cond_argmax = jnp.logical_not(cond_uniform) & (m_f <= 1.0 + 2.0 * size)
    cond_bisect = jnp.logical_not(cond_uniform) & jnp.logical_not(cond_argmax)

    # Default = uniform branch (also guarantees initialized outputs even if
    # NaN inputs poison the predicates).
    prob_ref[...] = jnp.where(mask, 1.0 / m_f, 0.0)
    loss_ref[0] = vmean

    @pl.when(cond_argmax)
    def _():
        is_max = jnp.where(mask & (v0 == vmax), 1.0, 0.0)
        prob = is_max / jnp.sum(is_max)
        prob_ref[...] = prob
        loss_ref[0] = jnp.sum(prob * v0)

    @pl.when(cond_bisect)
    def _():
        # Sign of lmbda is static (lmbda == 0 handled in the wrapper).
        if lmbda > 0:
            v_inf = jnp.where(mask, v0, neg_inf)   # relu(v - eta) == 0 in pad
        else:
            v_inf = jnp.where(mask, v0, pos_inf)   # relu(eta - v) == 0 in pad
        # One replica of v per sublane row -> K independent eta evaluations
        # per target() call.  Hoisted out of the loops (broadcast is not CSEd
        # by JAX inside loop bodies).
        v_rep = jnp.broadcast_to(v_inf, (K, L))

        row = lax.broadcasted_iota(jnp.int32, (K, 1), 0)
        row_is0 = row == 0
        row_is1 = row == 1
        fracs = (row.astype(jnp.float32) + 1.0) * jnp.float32(1.0 / (K + 1))

        if lmbda > 0:
            def target_rows(etas):                       # etas: (K, 1)
                pp = jnp.maximum(v_rep - etas, 0.0)      # (K, L)
                s = jnp.sum(pp, axis=-1, keepdims=True)  # (K, 1)
                q = jnp.sum(pp * pp, axis=-1, keepdims=True)
                # mean((m*p - 1)^2) over the m real entries == m*q/s^2 - 1
                return m_f * q / (s * s) - 1.0 - size

            eta_min0 = -(1.0 / (jnp.sqrt(2.0 * size + 1.0) - 1.0)) * vmax
            eta_max0 = vmax
        else:
            def target_rows(etas):
                pp = jnp.maximum(etas - v_rep, 0.0)
                s = jnp.sum(pp, axis=-1, keepdims=True)
                q = jnp.sum(pp * pp, axis=-1, keepdims=True)
                return size - (m_f * q / (s * s) - 1.0)

            eta_min0 = vmin + 1e-05
            eta_max0 = vmax

        def target_pair(a, b):
            # f(a) on row 0, f(b) on row 1 in a single vectorized eval.
            etas = jnp.where(row_is0, a, b)
            vals = target_rows(etas)
            lo = jnp.sum(jnp.where(row_is0, vals, 0.0))
            up = jnp.sum(jnp.where(row_is1, vals, 0.0))
            return lo, up

        # --- bracket expansion: early-exit while loop, both endpoints per
        #     step evaluated in one vector call (torch's loop is unbounded;
        #     capped at max_expand range-doublings for safety) ---
        def exp_cond(c):
            it, _, _, lo, up = c
            return ((lo > 0.0) | (up < 0.0)) & (it < max_expand)

        def exp_body(c):
            it, emin, emax, lo, up = c
            length = emax - emin
            c1 = lo > 0.0
            emax1 = jnp.where(c1, emin, emax)
            emin1 = jnp.where(c1, emin - 2.0 * length, emin)
            c2 = up < 0.0
            emin2 = jnp.where(c2, emax1, emin1)
            emax2 = jnp.where(c2, emax1 + 2.0 * length, emax1)
            lo2, up2 = target_pair(emin2, emax2)
            return (it + 1, emin2, emax2, lo2, up2)

        lo0, up0 = target_pair(eta_min0, eta_max0)
        carry = (jnp.int32(0), eta_min0, eta_max0, lo0, up0)
        _, emin, emax, _, _ = lax.while_loop(exp_cond, exp_body, carry)

        # --- K-way multisection: K candidate etas per step, early exit on
        #     the first step where some |target| <= tol; falls back to the
        #     bracket midpoint after max_iter steps (as torch does). ---
        def bi_cond(c):
            it, emin_c, emax_c, _, done = c
            return (done == 0) & (it < max_iter) & (emax_c > emin_c)

        def bi_body(c):
            it, emin_c, emax_c, eta_ret, done = c
            etas = emin_c + fracs * (emax_c - emin_c)    # (K, 1) interior pts
            vals = target_rows(etas)                     # (K, 1)
            hit = jnp.abs(vals) <= tol
            any_hit = jnp.max(jnp.where(hit, 1.0, 0.0)) > 0.0
            eta_hit = jnp.min(jnp.where(hit, etas, pos_inf))
            eta_ret = jnp.where(any_hit, eta_hit, eta_ret)
            # f is increasing: keep the tightest enclosing sub-interval
            # (NaN target values never move the bracket, as in torch).
            new_emin = jnp.maximum(
                emin_c, jnp.max(jnp.where(vals < 0.0, etas, neg_inf)))
            new_emax = jnp.minimum(
                emax_c, jnp.min(jnp.where(vals > 0.0, etas, pos_inf)))
            emin_c = jnp.where(any_hit, emin_c, new_emin)
            emax_c = jnp.where(any_hit, emax_c, new_emax)
            return (it + 1, emin_c, emax_c, eta_ret, any_hit.astype(jnp.int32))

        carry = (jnp.int32(0), emin, emax, jnp.float32(0.0), jnp.int32(0))
        _, emin, emax, eta_ret, done = lax.while_loop(bi_cond, bi_body, carry)
        eta_star = jnp.where(done == 1, eta_ret, 0.5 * (emin + emax))

        # --- epilogue: one reduce for S, one exact reciprocal shared by the
        #     prob store and the loss reduce. ---
        if lmbda > 0:
            pp = jnp.maximum(v_inf - eta_star, 0.0)      # (1, L), 0 in padding
        else:
            pp = jnp.maximum(eta_star - v_inf, 0.0)
        inv_s = 1.0 / jnp.sum(pp)
        prob_ref[...] = pp * inv_s
        loss_ref[0] = jnp.sum(pp * v0) * inv_s           # torch.dot(prob, v)


def distributional_variance_penalization(v, lmbda, gamma=1, tol=1e-4,
                                          max_iter=1000):
    """Forward pass of DistributionalVariancePenalization. Returns (loss, prob)."""
    v = jnp.asarray(v, jnp.float32)
    m = v.shape[0]
    if lmbda == 0:
        prob = jnp.ones_like(v) / m
        return jnp.mean(v), prob
    if m == 1:
        # var(ddof=1) is undefined; torch's forward lands on the uniform branch.
        return v[0], jnp.ones_like(v)

    L = max(128, ((m + 127) // 128) * 128)
    v_pad = jnp.zeros((1, L), jnp.float32).at[0, :m].set(v)

    kernel = functools.partial(
        _dvp_kernel, m=m, lmbda=float(lmbda), gamma=gamma, tol=float(tol),
        max_iter=int(max_iter), max_expand=64)

    loss, prob = pl.pallas_call(
        kernel,
        out_shape=(jax.ShapeDtypeStruct((1,), jnp.float32),
                   jax.ShapeDtypeStruct((1, L), jnp.float32)),
        in_specs=[pl.BlockSpec(memory_space=pltpu.MemorySpace.VMEM)],
        out_specs=(pl.BlockSpec(memory_space=pltpu.MemorySpace.SMEM),
                   pl.BlockSpec(memory_space=pltpu.MemorySpace.VMEM)),
    )(v_pad)
    return loss[0], prob[0, :m]


def _reference(v, lmbda, gamma=1, tol=1e-4, max_iter=1000):
    """Pure-numpy mirror of the PyTorch forward pass (for sanity checking)."""
    v = np.asarray(v, np.float32)
    m = v.shape[0]
    if lmbda == 0:
        return float(v.mean()), np.ones_like(v) / m
    with np.errstate(all="ignore"):
        size = lmbda ** 2 * (v.var(ddof=1) ** (2 * gamma - 1))
        if (v.max() - v.min()) / v.max() <= 1e-5:
            prob = np.ones_like(v) / m
            return float(prob @ v), prob
        if m <= 1 + 2 * size:
            prob = (v == v.max()).astype(np.float32)
            prob /= prob.sum()
            return float(prob @ v), prob
        if lmbda > 0:
            def p(eta):
                pp = np.maximum(v - eta, 0.0)
                return pp / pp.sum()

            def f(eta):
                w = m * p(eta) - 1
                return np.mean(w ** 2) - size
            eta_min = -(1.0 / (np.sqrt(2 * size + 1) - 1)) * v.max()
            eta_max = v.max()
        else:
            def p(eta):
                pp = np.maximum(eta - v, 0.0)
                return pp / pp.sum()

            def f(eta):
                w = m * p(eta) - 1
                return size - np.mean(w ** 2)
            eta_min = v.min() + 1e-5
            eta_max = v.max()
        lower, upper = f(eta_min), f(eta_max)
        while lower > 0 or upper < 0:
            length = eta_max - eta_min
            if lower > 0:
                eta_max = eta_min
                eta_min = eta_min - 2 * length
            if upper < 0:
                eta_min = eta_max
                eta_max = eta_max + 2 * length
            lower, upper = f(eta_min), f(eta_max)
        eta_star = None
        for _ in range(max_iter):
            eta = 0.5 * (eta_min + eta_max)
            val = f(eta)
            if abs(val) <= tol:
                eta_star = eta
                break
            if val > 0:
                eta_max = eta
            elif val < 0:
                eta_min = eta
        if eta_star is None:
            eta_star = 0.5 * (eta_min + eta_max)
        prob = p(eta_star)
        return float(prob @ v), prob


if __name__ == "__main__":
    key = jax.random.PRNGKey(0)
    m = 200                      # batch of per-example losses
    v = jax.random.uniform(key, (m,), jnp.float32, minval=0.1, maxval=2.0)
    v_np = np.asarray(v)

    for lmbda in (1.0, -0.5):    # exercise both solver branches
        loss, prob = distributional_variance_penalization(v, lmbda, gamma=1)
        loss = jax.block_until_ready(loss)
        prob = jax.block_until_ready(prob)

        ref_loss, ref_prob = _reference(v_np, lmbda, gamma=1)
        assert np.isfinite(float(loss)), (lmbda, float(loss))
        assert abs(float(jnp.sum(prob)) - 1.0) < 1e-3, (lmbda,
                                                        float(jnp.sum(prob)))
        assert abs(float(loss) - ref_loss) <= 2e-2 * max(1.0, abs(ref_loss)), (
            lmbda, float(loss), ref_loss)

    print("KERNEL_OK")
</pallas_src>

<mosaic_0001>
module attributes {stable_mosaic.version = 11 : i64} {
  func.func @_dvp_kernel(%arg0: memref<1x256xf32, #tpu.memory_space<vmem>>, %arg1: memref<1xf32, #tpu.memory_space<smem>>, %arg2: memref<1x256xf32, #tpu.memory_space<vmem>>) attributes {dimension_semantics = [], scalar_prefetch = 0 : i64, scratch_operands = 0 : i64, tpu.core_type = #tpu.core_type<tc>} {
    %c0 = arith.constant 0 : index
    %c0_0 = arith.constant 0 : index
    %0 = vector.load %arg0[%c0, %c0_0] : memref<1x256xf32, #tpu.memory_space<vmem>>, vector<1x256xf32>
    %1 = tpu.iota {dimensions = array<i32: 1>} : vector<1x256xi32>
    %c200_i32 = arith.constant 200 : i32
    %2 = vector.broadcast %c200_i32 : i32 to vector<1x256xi32>
    %3 = arith.cmpi slt, %1, %2 : vector<1x256xi32>
    %cst = arith.constant 0xFF800000 : f32
    %4 = vector.broadcast %cst : f32 to vector<1x256xf32>
    %5 = arith.select %3, %0, %4 : vector<1x256xi1>, vector<1x256xf32>
    %6 = vector.shape_cast %5 : vector<1x256xf32> to vector<1x1x256xf32>
    %cst_1 = arith.constant dense<0xFF800000> : vector<1xf32>
    %7 = vector.multi_reduction <maximumf>, %6, %cst_1 [1, 2] : vector<1x1x256xf32> to vector<1xf32>
    %8 = vector.shape_cast %7 : vector<1xf32> to vector<1x1x1xf32>
    %9 = vector.extract %8[0, 0, 0] : f32 from vector<1x1x1xf32>
    %cst_2 = arith.constant 0x7F800000 : f32
    %10 = vector.broadcast %cst_2 : f32 to vector<1x256xf32>
    %11 = arith.select %3, %0, %10 : vector<1x256xi1>, vector<1x256xf32>
    %12 = vector.shape_cast %11 : vector<1x256xf32> to vector<1x1x256xf32>
    %cst_3 = arith.constant dense<0x7F800000> : vector<1xf32>
    %13 = vector.multi_reduction <minimumf>, %12, %cst_3 [1, 2] : vector<1x1x256xf32> to vector<1xf32>
    %14 = vector.shape_cast %13 : vector<1xf32> to vector<1x1x1xf32>
    %15 = vector.extract %14[0, 0, 0] : f32 from vector<1x1x1xf32>
    %16 = vector.shape_cast %0 : vector<1x256xf32> to vector<1x1x256xf32>
    %cst_4 = arith.constant dense<0.000000e+00> : vector<1xf32>
    %17 = vector.multi_reduction <add>, %16, %cst_4 [1, 2] : vector<1x1x256xf32> to vector<1xf32>
    %18 = vector.shape_cast %17 : vector<1xf32> to vector<1x1x1xf32>
    %19 = vector.extract %18[0, 0, 0] : f32 from vector<1x1x1xf32>
    %20 = arith.mulf %0, %0 : vector<1x256xf32>
    %21 = vector.shape_cast %20 : vector<1x256xf32> to vector<1x1x256xf32>
    %cst_5 = arith.constant dense<0.000000e+00> : vector<1xf32>
    %22 = vector.multi_reduction <add>, %21, %cst_5 [1, 2] : vector<1x1x256xf32> to vector<1xf32>
    %23 = vector.shape_cast %22 : vector<1xf32> to vector<1x1x1xf32>
    %24 = vector.extract %23[0, 0, 0] : f32 from vector<1x1x1xf32>
    %cst_6 = arith.constant 2.000000e+02 : f32
    %25 = arith.divf %19, %cst_6 : f32
    %cst_7 = arith.constant 2.000000e+02 : f32
    %26 = arith.mulf %cst_7, %25 : f32
    %27 = arith.mulf %26, %25 : f32
    %28 = arith.subf %24, %27 : f32
    %cst_8 = arith.constant 2.000000e+02 : f32
    %cst_9 = arith.constant 1.000000e+00 : f32
    %29 = arith.subf %cst_8, %cst_9 : f32
    %30 = arith.divf %28, %29 : f32
    %cst_10 = arith.constant 1.000000e+00 : f32
    %31 = arith.mulf %cst_10, %30 : f32
    %32 = arith.subf %9, %15 : f32
    %33 = arith.divf %32, %9 : f32
    %cst_11 = arith.constant 9.99999974E-6 : f32
    %34 = arith.cmpf ole, %33, %cst_11 : f32
    %true = arith.constant true
    %35 = arith.xori %34, %true : i1
    %cst_12 = arith.constant 2.000000e+00 : f32
    %36 = arith.mulf %cst_12, %31 : f32
    %cst_13 = arith.constant 1.000000e+00 : f32
    %37 = arith.addf %cst_13, %36 : f32
    %cst_14 = arith.constant 2.000000e+02 : f32
    %38 = arith.cmpf ole, %cst_14, %37 : f32
    %39 = arith.andi %35, %38 : i1
    %true_15 = arith.constant true
    %40 = arith.xori %34, %true_15 : i1
    %true_16 = arith.constant true
    %41 = arith.xori %39, %true_16 : i1
    %42 = arith.andi %40, %41 : i1
    %cst_17 = arith.constant 1.000000e+00 : f32
    %cst_18 = arith.constant 2.000000e+02 : f32
    %43 = arith.divf %cst_17, %cst_18 : f32
    %cst_19 = arith.constant 0.000000e+00 : f32
    %44 = vector.broadcast %43 : f32 to vector<1x256xf32>
    %45 = vector.broadcast %cst_19 : f32 to vector<1x256xf32>
    %46 = arith.select %3, %44, %45 : vector<1x256xi1>, vector<1x256xf32>
    %c0_20 = arith.constant 0 : index
    %c0_21 = arith.constant 0 : index
    %47 = vector.load %arg2[%c0_20, %c0_21] : memref<1x256xf32, #tpu.memory_space<vmem>>, vector<1x256xf32>
    tpu.vector_store %arg2[%c0_20, %c0_21], %46 {strides = array<i32>} : memref<1x256xf32, #tpu.memory_space<vmem>>, vector<1x256xf32>,
    %c0_22 = arith.constant 0 : index
    %48 = memref.load %arg1[%c0_22] : memref<1xf32, #tpu.memory_space<smem>>
    memref.store %25, %arg1[%c0_22] : memref<1xf32, #tpu.memory_space<smem>>
    %49 = arith.extui %39 : i1 to i32
    %c0_i32 = arith.constant 0 : i32
    %50 = arith.cmpi ne, %49, %c0_i32 : i32
    scf.if %50 {
      %53 = vector.broadcast %9 : f32 to vector<1x256xf32>
      %54 = arith.cmpf oeq, %0, %53 : vector<1x256xf32>
      %55 = arith.andi %3, %54 : vector<1x256xi1>
      %cst_27 = arith.constant 1.000000e+00 : f32
      %cst_28 = arith.constant 0.000000e+00 : f32
      %56 = vector.broadcast %cst_27 : f32 to vector<1x256xf32>
      %57 = vector.broadcast %cst_28 : f32 to vector<1x256xf32>
      %58 = arith.select %55, %56, %57 : vector<1x256xi1>, vector<1x256xf32>
      %59 = vector.shape_cast %58 : vector<1x256xf32> to vector<1x1x256xf32>
      %cst_29 = arith.constant dense<0.000000e+00> : vector<1xf32>
      %60 = vector.multi_reduction <add>, %59, %cst_29 [1, 2] : vector<1x1x256xf32> to vector<1xf32>
      %61 = vector.shape_cast %60 : vector<1xf32> to vector<1x1x1xf32>
      %62 = vector.extract %61[0, 0, 0] : f32 from vector<1x1x1xf32>
      %63 = vector.broadcast %62 : f32 to vector<1x256xf32>
      %64 = arith.divf %58, %63 : vector<1x256xf32>
      %c0_30 = arith.constant 0 : index
      %c0_31 = arith.constant 0 : index
      %65 = vector.load %arg2[%c0_30, %c0_31] : memref<1x256xf32, #tpu.memory_space<vmem>>, vector<1x256xf32>
      tpu.vector_store %arg2[%c0_30, %c0_31], %64 {strides = array<i32>} : memref<1x256xf32, #tpu.memory_space<vmem>>, vector<1x256xf32>,
      %66 = arith.mulf %64, %0 : vector<1x256xf32>
      %67 = vector.shape_cast %66 : vector<1x256xf32> to vector<1x1x256xf32>
      %cst_32 = arith.constant dense<0.000000e+00> : vector<1xf32>
      %68 = vector.multi_reduction <add>, %67, %cst_32 [1, 2] : vector<1x1x256xf32> to vector<1xf32>
      %69 = vector.shape_cast %68 : vector<1xf32> to vector<1x1x1xf32>
      %70 = vector.extract %69[0, 0, 0] : f32 from vector<1x1x1xf32>
      %c0_33 = arith.constant 0 : index
      %71 = memref.load %arg1[%c0_33] : memref<1xf32, #tpu.memory_space<smem>>
      memref.store %70, %arg1[%c0_33] : memref<1xf32, #tpu.memory_space<smem>>
    } else {
    }
    %51 = arith.extui %42 : i1 to i32
    %cst_23 = arith.constant 0xFF800000 : f32
    %cst_24 = arith.constant 2.000000e+02 : f32
    %cst_25 = arith.constant 0x7F800000 : f32
    %c0_i32_26 = arith.constant 0 : i32
    %52 = arith.cmpi ne, %51, %c0_i32_26 : i32
    scf.if %52 {
      %53 = vector.broadcast %cst_23 : f32 to vector<1x256xf32>
      %54 = arith.select %3, %0, %53 : vector<1x256xi1>, vector<1x256xf32>
      %55 = vector.shape_cast %54 : vector<1x256xf32> to vector<1x256xf32>
      %56 = vector.broadcast %55 : vector<1x256xf32> to vector<8x256xf32>
      %57 = tpu.iota {dimensions = array<i32: 0>} : vector<8x1xi32>
      %c0_i32_27 = arith.constant 0 : i32
      %58 = vector.broadcast %c0_i32_27 : i32 to vector<8x1xi32>
      %59 = arith.cmpi eq, %57, %58 : vector<8x1xi32>
      %c1_i32 = arith.constant 1 : i32
      %60 = vector.broadcast %c1_i32 : i32 to vector<8x1xi32>
      %61 = arith.cmpi eq, %57, %60 : vector<8x1xi32>
      %62 = arith.sitofp %57 : vector<8x1xi32> to vector<8x1xf32>
      %cst_28 = arith.constant 1.000000e+00 : f32
      %63 = vector.broadcast %cst_28 : f32 to vector<8x1xf32>
      %64 = arith.addf %62, %63 : vector<8x1xf32>
      %cst_29 = arith.constant 0.111111112 : f32
      %65 = vector.broadcast %cst_29 : f32 to vector<8x1xf32>
      %66 = arith.mulf %64, %65 : vector<8x1xf32>
      %cst_30 = arith.constant 2.000000e+00 : f32
      %67 = arith.mulf %cst_30, %31 : f32
      %cst_31 = arith.constant 1.000000e+00 : f32
      %68 = arith.addf %67, %cst_31 : f32
      %69 = math.sqrt %68 : f32
      %cst_32 = arith.constant 1.000000e+00 : f32
      %70 = arith.subf %69, %cst_32 : f32
      %cst_33 = arith.constant 1.000000e+00 : f32
      %71 = arith.divf %cst_33, %70 : f32
      %cst_34 = arith.constant 0.000000e+00 : f32
      %72 = arith.subf %cst_34, %71 : f32
      %73 = arith.mulf %72, %9 : f32
      %74 = vector.broadcast %73 : f32 to vector<8x1xf32>
      %75 = vector.broadcast %9 : f32 to vector<8x1xf32>
      %76 = arith.select %59, %74, %75 : vector<8x1xi1>, vector<8x1xf32>
      %77 = vector.broadcast %76 : vector<8x1xf32> to vector<8x256xf32>
      %78 = arith.subf %56, %77 : vector<8x256xf32>
      %cst_35 = arith.constant 0.000000e+00 : f32
      %79 = vector.broadcast %cst_35 : f32 to vector<8x256xf32>
      %80 = arith.maximumf %78, %79 : vector<8x256xf32>
      %cst_36 = arith.constant dense<0.000000e+00> : vector<8xf32>
      %81 = vector.multi_reduction <add>, %80, %cst_36 [1] : vector<8x256xf32> to vector<8xf32>
      %82 = vector.shape_cast %81 : vector<8xf32> to vector<8x1xf32>
      %83 = arith.mulf %80, %80 : vector<8x256xf32>
      %cst_37 = arith.constant dense<0.000000e+00> : vector<8xf32>
      %84 = vector.multi_reduction <add>, %83, %cst_37 [1] : vector<8x256xf32> to vector<8xf32>
      %85 = vector.shape_cast %84 : vector<8xf32> to vector<8x1xf32>
      %86 = vector.broadcast %cst_24 : f32 to vector<8x1xf32>
      %87 = arith.mulf %86, %85 : vector<8x1xf32>
      %88 = arith.mulf %82, %82 : vector<8x1xf32>
      %89 = arith.divf %87, %88 : vector<8x1xf32>
      %cst_38 = arith.constant 1.000000e+00 : f32
      %90 = vector.broadcast %cst_38 : f32 to vector<8x1xf32>
      %91 = arith.subf %89, %90 : vector<8x1xf32>
      %92 = vector.broadcast %31 : f32 to vector<8x1xf32>
      %93 = arith.subf %91, %92 : vector<8x1xf32>
      %cst_39 = arith.constant 0.000000e+00 : f32
      %94 = vector.broadcast %cst_39 : f32 to vector<8x1xf32>
      %95 = arith.select %59, %93, %94 : vector<8x1xi1>, vector<8x1xf32>
      %96 = vector.shape_cast %95 : vector<8x1xf32> to vector<1x8x1xf32>
      %cst_40 = arith.constant dense<0.000000e+00> : vector<1xf32>
      %97 = vector.multi_reduction <add>, %96, %cst_40 [1, 2] : vector<1x8x1xf32> to vector<1xf32>
      %98 = vector.shape_cast %97 : vector<1xf32> to vector<1x1x1xf32>
      %99 = vector.extract %98[0, 0, 0] : f32 from vector<1x1x1xf32>
      %cst_41 = arith.constant 0.000000e+00 : f32
      %100 = vector.broadcast %cst_41 : f32 to vector<8x1xf32>
      %101 = arith.select %61, %93, %100 : vector<8x1xi1>, vector<8x1xf32>
      %102 = vector.shape_cast %101 : vector<8x1xf32> to vector<1x8x1xf32>
      %cst_42 = arith.constant dense<0.000000e+00> : vector<1xf32>
      %103 = vector.multi_reduction <add>, %102, %cst_42 [1, 2] : vector<1x8x1xf32> to vector<1xf32>
      %104 = vector.shape_cast %103 : vector<1xf32> to vector<1x1x1xf32>
      %105 = vector.extract %104[0, 0, 0] : f32 from vector<1x1x1xf32>
      %c0_i32_43 = arith.constant 0 : i32
      %106:5 = scf.while (%arg3 = %c0_i32_43, %arg4 = %73, %arg5 = %9, %arg6 = %99, %arg7 = %105) : (i32, f32, f32, f32, f32) -> (i32, f32, f32, f32, f32) {
        %cst_56 = arith.constant 0.000000e+00 : f32
        %131 = arith.cmpf ogt, %arg6, %cst_56 : f32
        %cst_57 = arith.constant 0.000000e+00 : f32
        %132 = arith.cmpf olt, %arg7, %cst_57 : f32
        %133 = arith.ori %131, %132 : i1
        %c64_i32 = arith.constant 64 : i32
        %134 = arith.cmpi slt, %arg3, %c64_i32 : i32
        %135 = arith.andi %133, %134 : i1
        scf.condition(%135) %arg3, %arg4, %arg5, %arg6, %arg7 : i32, f32, f32, f32, f32
      } do {
      ^bb0(%arg3: i32, %arg4: f32, %arg5: f32, %arg6: f32, %arg7: f32):
        %131 = arith.subf %arg5, %arg4 : f32
        %cst_56 = arith.constant 0.000000e+00 : f32
        %132 = arith.cmpf ogt, %arg6, %cst_56 : f32
        %133 = arith.select %132, %arg4, %arg5 : f32
        %cst_57 = arith.constant 2.000000e+00 : f32
        %134 = arith.mulf %cst_57, %131 : f32
        %135 = arith.subf %arg4, %134 : f32
        %136 = arith.select %132, %135, %arg4 : f32
        %cst_58 = arith.constant 0.000000e+00 : f32
        %137 = arith.cmpf olt, %arg7, %cst_58 : f32
        %138 = arith.select %137, %133, %136 : f32
        %cst_59 = arith.constant 2.000000e+00 : f32
        %139 = arith.mulf %cst_59, %131 : f32
        %140 = arith.addf %133, %139 : f32
        %141 = arith.select %137, %140, %133 : f32
        %142 = vector.broadcast %138 : f32 to vector<8x1xf32>
        %143 = vector.broadcast %141 : f32 to vector<8x1xf32>
        %144 = arith.select %59, %142, %143 : vector<8x1xi1>, vector<8x1xf32>
        %145 = vector.broadcast %144 : vector<8x1xf32> to vector<8x256xf32>
        %146 = arith.subf %56, %145 : vector<8x256xf32>
        %cst_60 = arith.constant 0.000000e+00 : f32
        %147 = vector.broadcast %cst_60 : f32 to vector<8x256xf32>
        %148 = arith.maximumf %146, %147 : vector<8x256xf32>
        %cst_61 = arith.constant dense<0.000000e+00> : vector<8xf32>
        %149 = vector.multi_reduction <add>, %148, %cst_61 [1] : vector<8x256xf32> to vector<8xf32>
        %150 = vector.shape_cast %149 : vector<8xf32> to vector<8x1xf32>
        %151 = arith.mulf %148, %148 : vector<8x256xf32>
        %cst_62 = arith.constant dense<0.000000e+00> : vector<8xf32>
        %152 = vector.multi_reduction <add>, %151, %cst_62 [1] : vector<8x256xf32> to vector<8xf32>
        %153 = vector.shape_cast %152 : vector<8xf32> to vector<8x1xf32>
        %154 = vector.broadcast %cst_24 : f32 to vector<8x1xf32>
        %155 = arith.mulf %154, %153 : vector<8x1xf32>
        %156 = arith.mulf %150, %150 : vector<8x1xf32>
        %157 = arith.divf %155, %156 : vector<8x1xf32>
        %cst_63 = arith.constant 1.000000e+00 : f32
        %158 = vector.broadcast %cst_63 : f32 to vector<8x1xf32>
        %159 = arith.subf %157, %158 : vector<8x1xf32>
        %160 = vector.broadcast %31 : f32 to vector<8x1xf32>
        %161 = arith.subf %159, %160 : vector<8x1xf32>
        %cst_64 = arith.constant 0.000000e+00 : f32
        %162 = vector.broadcast %cst_64 : f32 to vector<8x1xf32>
        %163 = arith.select %59, %161, %162 : vector<8x1xi1>, vector<8x1xf32>
        %164 = vector.shape_cast %163 : vector<8x1xf32> to vector<1x8x1xf32>
        %cst_65 = arith.constant dense<0.000000e+00> : vector<1xf32>
        %165 = vector.multi_reduction <add>, %164, %cst_65 [1, 2] : vector<1x8x1xf32> to vector<1xf32>
        %166 = vector.shape_cast %165 : vector<1xf32> to vector<1x1x1xf32>
        %167 = vector.extract %166[0, 0, 0] : f32 from vector<1x1x1xf32>
        %cst_66 = arith.constant 0.000000e+00 : f32
        %168 = vector.broadcast %cst_66 : f32 to vector<8x1xf32>
        %169 = arith.select %61, %161, %168 : vector<8x1xi1>, vector<8x1xf32>
        %170 = vector.shape_cast %169 : vector<8x1xf32> to vector<1x8x1xf32>
        %cst_67 = arith.constant dense<0.000000e+00> : vector<1xf32>
        %171 = vector.multi_reduction <add>, %170, %cst_67 [1, 2] : vector<1x8x1xf32> to vector<1xf32>
        %172 = vector.shape_cast %171 : vector<1xf32> to vector<1x1x1xf32>
        %173 = vector.extract %172[0, 0, 0] : f32 from vector<1x1x1xf32>
        %c1_i32_68 = arith.constant 1 : i32
        %174 = arith.addi %arg3, %c1_i32_68 : i32
        scf.yield %174, %138, %141, %167, %173 : i32, f32, f32, f32, f32
      }
      %c0_i32_44 = arith.constant 0 : i32
      %cst_45 = arith.constant 0.000000e+00 : f32
      %c0_i32_46 = arith.constant 0 : i32
      %107:5 = scf.while (%arg3 = %c0_i32_44, %arg4 = %106#1, %arg5 = %106#2, %arg6 = %cst_45, %arg7 = %c0_i32_46) : (i32, f32, f32, f32, i32) -> (i32, f32, f32, f32, i32) {
        %c0_i32_56 = arith.constant 0 : i32
        %131 = arith.cmpi eq, %arg7, %c0_i32_56 : i32
        %c1000_i32 = arith.constant 1000 : i32
        %132 = arith.cmpi slt, %arg3, %c1000_i32 : i32
        %133 = arith.andi %131, %132 : i1
        %134 = arith.cmpf ogt, %arg5, %arg4 : f32
        %135 = arith.andi %133, %134 : i1
        scf.condition(%135) %arg3, %arg4, %arg5, %arg6, %arg7 : i32, f32, f32, f32, i32
      } do {
      ^bb0(%arg3: i32, %arg4: f32, %arg5: f32, %arg6: f32, %arg7: i32):
        %131 = arith.subf %arg5, %arg4 : f32
        %132 = vector.broadcast %131 : f32 to vector<8x1xf32>
        %133 = arith.mulf %66, %132 : vector<8x1xf32>
        %134 = vector.broadcast %arg4 : f32 to vector<8x1xf32>
        %135 = arith.addf %134, %133 : vector<8x1xf32>
        %136 = vector.broadcast %135 : vector<8x1xf32> to vector<8x256xf32>
        %137 = arith.subf %56, %136 : vector<8x256xf32>
        %cst_56 = arith.constant 0.000000e+00 : f32
        %138 = vector.broadcast %cst_56 : f32 to vector<8x256xf32>
        %139 = arith.maximumf %137, %138 : vector<8x256xf32>
        %cst_57 = arith.constant dense<0.000000e+00> : vector<8xf32>
        %140 = vector.multi_reduction <add>, %139, %cst_57 [1] : vector<8x256xf32> to vector<8xf32>
        %141 = vector.shape_cast %140 : vector<8xf32> to vector<8x1xf32>
        %142 = arith.mulf %139, %139 : vector<8x256xf32>
        %cst_58 = arith.constant dense<0.000000e+00> : vector<8xf32>
        %143 = vector.multi_reduction <add>, %142, %cst_58 [1] : vector<8x256xf32> to vector<8xf32>
        %144 = vector.shape_cast %143 : vector<8xf32> to vector<8x1xf32>
        %145 = vector.broadcast %cst_24 : f32 to vector<8x1xf32>
        %146 = arith.mulf %145, %144 : vector<8x1xf32>
        %147 = arith.mulf %141, %141 : vector<8x1xf32>
        %148 = arith.divf %146, %147 : vector<8x1xf32>
        %cst_59 = arith.constant 1.000000e+00 : f32
        %149 = vector.broadcast %cst_59 : f32 to vector<8x1xf32>
        %150 = arith.subf %148, %149 : vector<8x1xf32>
        %151 = vector.broadcast %31 : f32 to vector<8x1xf32>
        %152 = arith.subf %150, %151 : vector<8x1xf32>
        %153 = math.absf %152 : vector<8x1xf32>
        %cst_60 = arith.constant 9.99999974E-5 : f32
        %154 = vector.broadcast %cst_60 : f32 to vector<8x1xf32>
        %155 = arith.cmpf ole, %153, %154 : vector<8x1xf32>
        %cst_61 = arith.constant 1.000000e+00 : f32
        %cst_62 = arith.constant 0.000000e+00 : f32
        %156 = vector.broadcast %cst_61 : f32 to vector<8x1xf32>
        %157 = vector.broadcast %cst_62 : f32 to vector<8x1xf32>
        %158 = arith.select %155, %156, %157 : vector<8x1xi1>, vector<8x1xf32>
        %159 = vector.shape_cast %158 : vector<8x1xf32> to vector<1x8x1xf32>
        %cst_63 = arith.constant dense<0xFF800000> : vector<1xf32>
        %160 = vector.multi_reduction <maximumf>, %159, %cst_63 [1, 2] : vector<1x8x1xf32> to vector<1xf32>
        %161 = vector.shape_cast %160 : vector<1xf32> to vector<1x1x1xf32>
        %162 = vector.extract %161[0, 0, 0] : f32 from vector<1x1x1xf32>
        %cst_64 = arith.constant 0.000000e+00 : f32
        %163 = arith.cmpf ogt, %162, %cst_64 : f32
        %164 = vector.broadcast %cst_25 : f32 to vector<8x1xf32>
        %165 = arith.select %155, %135, %164 : vector<8x1xi1>, vector<8x1xf32>
        %166 = vector.shape_cast %165 : vector<8x1xf32> to vector<1x8x1xf32>
        %cst_65 = arith.constant dense<0x7F800000> : vector<1xf32>
        %167 = vector.multi_reduction <minimumf>, %166, %cst_65 [1, 2] : vector<1x8x1xf32> to vector<1xf32>
        %168 = vector.shape_cast %167 : vector<1xf32> to vector<1x1x1xf32>
        %169 = vector.extract %168[0, 0, 0] : f32 from vector<1x1x1xf32>
        %170 = arith.select %163, %169, %arg6 : f32
        %cst_66 = arith.constant 0.000000e+00 : f32
        %171 = vector.broadcast %cst_66 : f32 to vector<8x1xf32>
        %172 = arith.cmpf olt, %152, %171 : vector<8x1xf32>
        %173 = vector.broadcast %cst_23 : f32 to vector<8x1xf32>
        %174 = arith.select %172, %135, %173 : vector<8x1xi1>, vector<8x1xf32>
        %175 = vector.shape_cast %174 : vector<8x1xf32> to vector<1x8x1xf32>
        %cst_67 = arith.constant dense<0xFF800000> : vector<1xf32>
        %176 = vector.multi_reduction <maximumf>, %175, %cst_67 [1, 2] : vector<1x8x1xf32> to vector<1xf32>
        %177 = vector.shape_cast %176 : vector<1xf32> to vector<1x1x1xf32>
        %178 = vector.extract %177[0, 0, 0] : f32 from vector<1x1x1xf32>
        %179 = arith.maximumf %arg4, %178 : f32
        %cst_68 = arith.constant 0.000000e+00 : f32
        %180 = vector.broadcast %cst_68 : f32 to vector<8x1xf32>
        %181 = arith.cmpf ogt, %152, %180 : vector<8x1xf32>
        %182 = vector.broadcast %cst_25 : f32 to vector<8x1xf32>
        %183 = arith.select %181, %135, %182 : vector<8x1xi1>, vector<8x1xf32>
        %184 = vector.shape_cast %183 : vector<8x1xf32> to vector<1x8x1xf32>
        %cst_69 = arith.constant dense<0x7F800000> : vector<1xf32>
        %185 = vector.multi_reduction <minimumf>, %184, %cst_69 [1, 2] : vector<1x8x1xf32> to vector<1xf32>
        %186 = vector.shape_cast %185 : vector<1xf32> to vector<1x1x1xf32>
        %187 = vector.extract %186[0, 0, 0] : f32 from vector<1x1x1xf32>
        %188 = arith.minimumf %arg5, %187 : f32
        %189 = arith.select %163, %arg4, %179 : f32
        %190 = arith.select %163, %arg5, %188 : f32
        %c1_i32_70 = arith.constant 1 : i32
        %191 = arith.addi %arg3, %c1_i32_70 : i32
        %192 = arith.extui %163 : i1 to i32
        scf.yield %191, %189, %190, %170, %192 : i32, f32, f32, f32, i32
      }
      %c1_i32_47 = arith.constant 1 : i32
      %108 = arith.cmpi eq, %107#4, %c1_i32_47 : i32
      %109 = arith.addf %107#1, %107#2 : f32
      %cst_48 = arith.constant 5.000000e-01 : f32
      %110 = arith.mulf %cst_48, %109 : f32
      %111 = arith.select %108, %107#3, %110 : f32
      %112 = vector.broadcast %111 : f32 to vector<1x256xf32>
      %113 = arith.subf %54, %112 : vector<1x256xf32>
      %cst_49 = arith.constant 0.000000e+00 : f32
      %114 = vector.broadcast %cst_49 : f32 to vector<1x256xf32>
      %115 = arith.maximumf %113, %114 : vector<1x256xf32>
      %116 = vector.shape_cast %115 : vector<1x256xf32> to vector<1x1x256xf32>
      %cst_50 = arith.constant dense<0.000000e+00> : vector<1xf32>
      %117 = vector.multi_reduction <add>, %116, %cst_50 [1, 2] : vector<1x1x256xf32> to vector<1xf32>
      %118 = vector.shape_cast %117 : vector<1xf32> to vector<1x1x1xf32>
      %119 = vector.extract %118[0, 0, 0] : f32 from vector<1x1x1xf32>
      %cst_51 = arith.constant 1.000000e+00 : f32
      %120 = arith.divf %cst_51, %119 : f32
      %121 = vector.broadcast %120 : f32 to vector<1x256xf32>
      %122 = arith.mulf %115, %121 : vector<1x256xf32>
      %c0_52 = arith.constant 0 : index
      %c0_53 = arith.constant 0 : index
      %123 = vector.load %arg2[%c0_52, %c0_53] : memref<1x256xf32, #tpu.memory_space<vmem>>, vector<1x256xf32>
      tpu.vector_store %arg2[%c0_52, %c0_53], %122 {strides = array<i32>} : memref<1x256xf32, #tpu.memory_space<vmem>>, vector<1x256xf32>,
      %124 = arith.mulf %115, %0 : vector<1x256xf32>
      %125 = vector.shape_cast %124 : vector<1x256xf32> to vector<1x1x256xf32>
      %cst_54 = arith.constant dense<0.000000e+00> : vector<1xf32>
      %126 = vector.multi_reduction <add>, %125, %cst_54 [1, 2] : vector<1x1x256xf32> to vector<1xf32>
      %127 = vector.shape_cast %126 : vector<1xf32> to vector<1x1x1xf32>
      %128 = vector.extract %127[0, 0, 0] : f32 from vector<1x1x1xf32>
      %129 = arith.mulf %128, %120 : f32
      %c0_55 = arith.constant 0 : index
      %130 = memref.load %arg1[%c0_55] : memref<1xf32, #tpu.memory_space<smem>>
      memref.store %129, %arg1[%c0_55] : memref<1xf32, #tpu.memory_space<smem>>
    } else {
    }
    return
  }
}

</mosaic_0001>

<llo_original>
// kernel: tpu_custom_call.1
$region0: #{tpu_custom_call.1}
  #allocation0 [shape = 'u32[]', space=smem, size = 0x4, offset = 0x4, fixed_abs, tag = 'smem constant byte address 0x4 - core index']
  #allocation1 [shape = 'u32[144,128]{1,0:T(1,128)}', space=vmem, size = 0x12000, scoped, tag = 'internal scratch']
  %s0 = inlined_call_operand.hbm [shape: f32[1,256], index: 0, kind: input, shape index: {}]
  %s1 = inlined_call_operand.hbm [shape: f32[1], index: 1, kind: output, shape index: {0}]
  %s2 = inlined_call_operand.hbm [shape: f32[1,256], index: 2, kind: output, shape index: {1}]
  %3 = xla_tuple %s1, %s2
  %s4 = sld [smem:[#allocation0]]
  $region48: #{tpu_custom_call.1} parent=0
    _
  %s6 = ssub.s32 1, %s4
  %s7 = scalar_select 0, %s6, %s4
  $region1: #{tpu_custom_call.1} parent=0
    #allocation2 [shape = 'u8[1024]{0}', space=vmem, size = 0x400, scoped, tag = 'input window, operand 0, single buffered']
    #allocation3 [shape = 's32[1]{0}', space=sflag, size = 0x4, scoped, tag = 'scoped memory for tpu_custom_call.1']
    #allocation4 [shape = 's32[1]{0}', space=sflag, size = 0x4, scoped, tag = 'scoped memory for tpu_custom_call.1']
    #allocation5 [shape = 's32[1]{0}', space=sflag, size = 0x4, scoped, tag = 'scoped memory for tpu_custom_call.1']
    #allocation6 [shape = 'u8[512]{0}', space=smem, size = 0x200, scoped, tag = 'output window, operand 0, single buffered']
    #allocation7 [shape = 'u8[1024]{0}', space=vmem, size = 0x400, scoped, tag = 'output window, operand 1, single buffered']
    %8 = vsyncpa [#allocation3], 0
    %9 = vsyncpa [#allocation5], 0
    %10 = vsyncpa [#allocation4], 0
    // Predicated region
    $region2: #{tpu_custom_call.1} parent=1 // pred_check
      _
    $region3: #{tpu_custom_call.1} parent=1 // pred_check_branch
      %12 = sbr.rel (0) target = $region5
    $region4: #{tpu_custom_call.1} parent=1 // pred_region
      %s14 = ssub.s32 32, 32
      %15 = vsyncadd [#allocation3], %s14
      %s17 = sshll.u32 [#allocation2], 4
      %s18 = int_to_ptr.vmem [resolvable:$true] %s17
      %20 = dma.hbm_to_vmem [thread:$0]  %s0, 32, %s18, [#allocation3]
    $region5: #{tpu_custom_call.1} parent=1 // pred_fallthru
      _
    // Predicated region
    $region6: #{tpu_custom_call.1} parent=1 // pred_check
      _
    $region7: #{tpu_custom_call.1} parent=1 // pred_check_branch
      %22 = sbr.rel (0) target = $region9
    $region8: #{tpu_custom_call.1} parent=1 // pred_region
      %23 = dma.done [#allocation3], 32
    $region9: #{tpu_custom_call.1} parent=1 // pred_fallthru
      _
    %v24 = vld [vmem:[#allocation2] sm:$0x3]
    %v25 = vlaneseq
    %v26 = vand.u32 %v25, 127
    %v27 = vadd.s32 %v26, 128
    %vm28 = vcmp.lt.s32.totalorder %v26, 200
    %vm29 = vcmp.lt.s32.totalorder %v27, 200
    %v31 = vlaneseq
    %v32 = vshrl.u32 %v31, 7
    %v33 = vsub.s32 0, %v32
    %v34 = vrot.slane %v24, %v33
    %v35 = vlaneseq
    %v36 = vshrl.u32 %v35, 7
    %v37 = vsub.s32 1, %v36
    %v38 = vrot.slane %v24, %v37
    %v41 = vsel %vm28, %v34, -inf
    %v42 = vsel %vm29, %v38, -inf
    %vm43 = vcmask 1040384
    %v44 = vsel %vm43, %v41, -inf
    %v45 = vsel %vm43, %v42, -inf
    %v46 = vmax.f32 %v44, %v45
    %47 = vmax.xlane.f32.xlu0 %v46
    %v48 = vpop.xlane.xlu0 %47
    %v49 = vrot.slane %v48, 4
    %v50 = vmax.f32 %v48, %v49
    %v51 = vrot.slane %v50, 2
    %v52 = vmax.f32 %v50, %v51
    %v53 = vrot.slane %v52, 1
    %v54 = vmax.f32 %v52, %v53
    %s55 = vtos %v54
    %v56 = vsel %vm28, %v34, inf
    %v57 = vsel %vm29, %v38, inf
    %v58 = vsel %vm43, %v56, inf
    %v59 = vsel %vm43, %v57, inf
    %v60 = vmin.f32 %v58, %v59
    %61 = vmin.xlane.f32.xlu0 %v60
    %v62 = vpop.xlane.xlu0 %61
    %v63 = vrot.slane %v62, 4
    %v64 = vmin.f32 %v62, %v63
    %v65 = vrot.slane %v64, 2
    %v66 = vmin.f32 %v64, %v65
    %v67 = vrot.slane %v66, 1
    %v68 = vmin.f32 %v66, %v67
    %s69 = vtos %v68
    %v70 = vsel %vm43, %v34, 0.0
    %v71 = vsel %vm43, %v38, 0.0
    %v72 = vadd.f32 %v70, %v71
    %73 = vadd.xlane.f32.xlu0 %v72
    %v74 = vpop.xlane.xlu0 %73
    %v75 = vrot.slane %v74, 4
    %v76 = vadd.f32 %v74, %v75
    %v77 = vrot.slane %v76, 2
    %v78 = vadd.f32 %v76, %v77
    %v79 = vrot.slane %v78, 1
    %v80 = vadd.f32 %v78, %v79
    %s81 = vtos %v80
    %v82 = vmul.f32 %v24, %v24
    %v84 = vlaneseq
    %v85 = vshrl.u32 %v84, 7
    %v86 = vsub.s32 0, %v85
    %v87 = vrot.slane %v82, %v86
    %v88 = vlaneseq
    %v89 = vshrl.u32 %v88, 7
    %v90 = vsub.s32 1, %v89
    %v91 = vrot.slane %v82, %v90
    %v94 = vsel %vm43, %v87, 0.0
    %v95 = vsel %vm43, %v91, 0.0
    %v96 = vadd.f32 %v94, %v95
    %97 = vadd.xlane.f32.xlu0 %v96
    %v98 = vpop.xlane.xlu0 %97
    %v99 = vrot.slane %v98, 4
    %v100 = vadd.f32 %v98, %v99
    %v101 = vrot.slane %v100, 2
    %v102 = vadd.f32 %v100, %v101
    %v103 = vrot.slane %v102, 1
    %v104 = vadd.f32 %v102, %v103
    %s105 = vtos %v104
    %v106 = vrcp.pop 200.0
    %s107 = vtos %v106
    %s108 = smul.f32 %s81, %s107
    %s109 = smul.f32 %s108, 200.0
    %s110 = smul.f32 %s109, %s108
    %s111 = ssub.f32 %s105, %s110
    %v112 = vrcp.pop 199.0
    %s113 = vtos %v112
    %s114 = smul.f32 %s111, %s113
    %s115 = ssub.f32 %s55, %s69
    %v116 = vstv %s55
    %v117 = vrcp.pop %v116
    %s118 = vtos %v117
    %s119 = smul.f32 %s115, %s118
    %p120 = scmp.le.f32.partialorder %s119, 1e-05
    %p121 = pneg %p120
    %s122 = smul.f32 %s114, 2.0
    %s123 = sadd.f32 %s122, 1.0
    %p124 = scmp.le.f32.partialorder 200.0, %s123
    %p125 = pnand %p121, %p124
    %p126 = pneg %p125
    %p127 = pneg %p126
    %p128 = pnand %p121, %p127
    %p129 = pneg %p128
    %v130 = vsel %vm28, 0.005, 0.0
    %v131 = vsel %vm29, 0.005, 0.0
    %v134 = vcombine.low %v130, %v131
    %v136 = vunpack.c.l.s4 1966171168
    %v137 = vunpack.c.0.s8 %v136
    %v138 = vlaneseq
    %v139 = vshrl.u32 %v138, 7
    %v140 = vsub.s32 %v137, %v139
    %v141 = vrot.slane %v134, %v140
    %v143 = vunpack.c.l.s4 1966171168
    %v144 = vunpack.c.0.s8 %v143
    %v145 = vlaneseq
    %v146 = vshrl.u32 %v145, 7
    %v147 = vsub.s32 %v144, %v146
    %v148 = vrot.slane %v141, %v147
    %v150 = vlaneseq
    %vm151 = vcmp.ge.s32.totalorder %v150, 0
    %vm152 = vcmp.lt.s32.totalorder %v150, 256
    %vm153 = vmand %vm151, %vm152
    %154 = vst.msk [vmem:[#allocation7] sm:$0x3] %vm153, %v148
    %s155 = scalar_lea.smem [#allocation6], 0
    %156 = sst [smem:[%s155]] %s108
    // Predicated region
    $region10: #{tpu_custom_call.1} parent=1 // pred_check
      _
    $region11: #{tpu_custom_call.1} parent=1 // pred_check_branch
      %158 = sbr.rel (%p125) target = $region13
    $region12: #{tpu_custom_call.1} parent=1 // pred_region
      %v159 = vstv %s55
      %vm160 = vcmp.eq.f32.partialorder %v24, %v159
      %v161 = vsel %vm160, 1, 0
      %v162 = vlaneseq
      %v163 = vshrl.u32 %v162, 7
      %v164 = vsub.s32 0, %v163
      %v165 = vrot.slane %v161, %v164
      %v166 = vlaneseq
      %v167 = vshrl.u32 %v166, 7
      %v168 = vsub.s32 1, %v167
      %v169 = vrot.slane %v161, %v168
      %vm170 = vcmp.ne.s32.totalorder %v165, 0
      %vm171 = vcmp.ne.s32.totalorder %v169, 0
      %vm172 = vmand %vm28, %vm170
      %vm173 = vmand %vm29, %vm171
      %v174 = vsel %vm172, 1.0, 0.0
      %v175 = vsel %vm173, 1.0, 0.0
      %v176 = vsel %vm43, %v174, 0.0
      %v177 = vsel %vm43, %v175, 0.0
      %v178 = vadd.f32 %v176, %v177
      %179 = vadd.xlane.f32.xlu0 %v178
      %v180 = vpop.xlane.xlu0 %179
      %v181 = vrot.slane %v180, 4
      %v182 = vadd.f32 %v180, %v181
      %v183 = vrot.slane %v182, 2
      %v184 = vadd.f32 %v182, %v183
      %v185 = vrot.slane %v184, 1
      %v186 = vadd.f32 %v184, %v185
      %s187 = vtos %v186
      %v188 = vstv %s187
      %v189 = vrcp.pop %v188
      %v190 = vmul.f32 %v174, %v189
      %v191 = vmul.f32 %v175, %v189
      %v194 = vcombine.low %v190, %v191
      %v196 = vunpack.c.l.s4 1966171168
      %v197 = vunpack.c.0.s8 %v196
      %v198 = vlaneseq
      %v199 = vshrl.u32 %v198, 7
      %v200 = vsub.s32 %v197, %v199
      %v201 = vrot.slane %v194, %v200
      %v203 = vunpack.c.l.s4 1966171168
      %v204 = vunpack.c.0.s8 %v203
      %v205 = vlaneseq
      %v206 = vshrl.u32 %v205, 7
      %v207 = vsub.s32 %v204, %v206
      %v208 = vrot.slane %v201, %v207
      %210 = vst.msk [vmem:[#allocation7] sm:$0x3] %vm153, %v208
      %v211 = vmul.f32 %v190, %v34
      %v212 = vmul.f32 %v191, %v38
      %v213 = vsel %vm43, %v211, 0.0
      %v214 = vsel %vm43, %v212, 0.0
      %v215 = vadd.f32 %v213, %v214
      %216 = vadd.xlane.f32.xlu0 %v215
      %v217 = vpop.xlane.xlu0 %216
      %v218 = vrot.slane %v217, 4
      %v219 = vadd.f32 %v217, %v218
      %v220 = vrot.slane %v219, 2
      %v221 = vadd.f32 %v219, %v220
      %v222 = vrot.slane %v221, 1
      %v223 = vadd.f32 %v221, %v222
      %s224 = vtos %v223
      %225 = sst [smem:[%s155]] %s224
    $region13: #{tpu_custom_call.1} parent=1 // pred_fallthru
      _
    // Predicated region
    $region14: #{tpu_custom_call.1} parent=1 // pred_check
      _
    $region15: #{tpu_custom_call.1} parent=1 // pred_check_branch
      %227 = sbr.rel (%p128) target = $region17
    $region16: #{tpu_custom_call.1} parent=1 // pred_region
      %v228 = vlaneseq
      %v229 = vshrl.u32 %v228, 7
      %v230 = vsub.s32 0, %v229
      %v231 = vrot.slane %v41, %v230
      %v232 = vlaneseq
      %v233 = vshrl.u32 %v232, 7
      %v234 = vsub.s32 0, %v233
      %v235 = vrot.slane %v42, %v234
      %v236 = vlaneseq
      %v237 = vshrl.u32 %v236, 7
      %vm238 = vcmp.eq.s32.totalorder %v237, 0
      %vm239 = vcmp.eq.s32.totalorder %v237, 1
      %v240 = vcvt.s32.f32 %v237
      %v241 = vadd.f32 %v240, 1.0
      %v242 = vmul.f32 %v241, 0.11111111
      %v243 = vstv %s123
      %v244 = vrsqrt.pop %v243
      %v245 = vmul.f32 %v243, %v244
      %vm246 = vcmp.eq.f32.partialorder %v243, inf
      %v247 = vsel %vm246, %v243, %v245
      %vm248 = vcmp.eq.f32.partialorder %v243, 0.0
      %v249 = vand.u32 %v243, 2147483648
      %v250 = vsel %vm248, %v249, %v247
      %s251 = vtos %v250
      %s252 = ssub.f32 %s251, 1.0
      %v253 = vstv %s252
      %v254 = vrcp.pop %v253
      %s255 = vtos %v254
      %s256 = ssub.f32 0.0, %s255
      %s257 = smul.f32 %s256, %s55
      %v258 = vstv %s257
      %v259 = vstv %s55
      %v260 = vsel %vm238, %v258, %v259
      %v261 = vsub.f32 %v231, %v260
      %v262 = vsub.f32 %v235, %v260
      %v263 = vmax.f32 %v261, 0.0
      %v264 = vmax.f32 %v262, 0.0
      %v265 = vadd.f32 %v263, %v264
      %266 = vadd.xlane.f32.xlu0 %v265
      %v267 = vpop.xlane.xlu0 %266
      %v268 = vmul.f32 %v263, %v263
      %v269 = vmul.f32 %v264, %v264
      %v270 = vadd.f32 %v268, %v269
      %271 = vadd.xlane.f32.xlu0 %v270
      %v272 = vpop.xlane.xlu0 %271
      %v273 = vmul.f32 %v272, 200.0
      %v274 = vmul.f32 %v267, %v267
      %v275 = vrcp.pop %v274
      %v276 = vmul.f32 %v273, %v275
      %v277 = vsub.f32 %v276, 1.0
      %v278 = vstv %s114
      %v279 = vsub.f32 %v277, %v278
      %v280 = vsel %vm238, %v279, 0.0
      %vm281 = vcmask 7168
      %v282 = vsel %vm281, %v280, 0.0
      %283 = vadd.xlane.f32.xlu0 %v282
      %v284 = vpop.xlane.xlu0 %283
      %v285 = vrot.slane %v284, 4
      %v286 = vadd.f32 %v284, %v285
      %v287 = vrot.slane %v286, 2
      %v288 = vadd.f32 %v286, %v287
      %v289 = vrot.slane %v288, 1
      %v290 = vadd.f32 %v288, %v289
      %s291 = vtos %v290
      %v292 = vsel %vm239, %v279, 0.0
      %v293 = vsel %vm281, %v292, 0.0
      %294 = vadd.xlane.f32.xlu0 %v293
      %v295 = vpop.xlane.xlu0 %294
      %v296 = vrot.slane %v295, 4
      %v297 = vadd.f32 %v295, %v296
      %v298 = vrot.slane %v297, 2
      %v299 = vadd.f32 %v297, %v298
      %v300 = vrot.slane %v299, 1
      %v301 = vadd.f32 %v299, %v300
      %s302 = vtos %v301
      // While loop
      $region18: #{tpu_custom_call.1} parent=16 // loop_pre_header
        _
      $region19: #{tpu_custom_call.1} parent=16 // loop_header
        %s304 = sphi 0, %s370
        %s305 = sphi %s257, %s324
        %s306 = sphi %s55, %s326
        %s307 = sphi %s291, %s358
        %s308 = sphi %s302, %s369
        %p309 = scmp.gt.f32.partialorder %s307, 0.0
        %p310 = scmp.lt.f32.partialorder %s308, 0.0
        %p311 = por %p309, %p310
        %p312 = scmp.lt.s32.totalorder %s304, 64
        %p313 = pnand %p311, %p312
        %p314 = pneg %p313
      $region20: #{tpu_custom_call.1} parent=16 // loop_header_branch
        %316 = sbr.rel (%p313) target = $region24
      $region21: #{tpu_custom_call.1} parent=16 // loop_body
        %s317 = ssub.f32 %s306, %s305
        %p318 = scmp.gt.f32.partialorder %s307, 0.0
        %s319 = scalar_select %p318, %s305, %s306
        %s320 = smul.f32 %s317, 2.0
        %s321 = ssub.f32 %s305, %s320
        %s322 = scalar_select %p318, %s321, %s305
        %p323 = scmp.lt.f32.partialorder %s308, 0.0
        %s324 = scalar_select %p323, %s319, %s322
        %s325 = sadd.f32 %s319, %s320
        %s326 = scalar_select %p323, %s325, %s319
        %v327 = vstv %s324
        %v328 = vstv %s326
        %v329 = vsel %vm238, %v327, %v328
        %v330 = vsub.f32 %v231, %v329
        %v331 = vsub.f32 %v235, %v329
        %v332 = vmax.f32 %v330, 0.0
        %v333 = vmax.f32 %v331, 0.0
        %v334 = vadd.f32 %v332, %v333
        %335 = vadd.xlane.f32.xlu0 %v334
        %v336 = vpop.xlane.xlu0 %335
        %v337 = vmul.f32 %v332, %v332
        %v338 = vmul.f32 %v333, %v333
        %v339 = vadd.f32 %v337, %v338
        %340 = vadd.xlane.f32.xlu0 %v339
        %v341 = vpop.xlane.xlu0 %340
        %v342 = vmul.f32 %v341, 200.0
        %v343 = vmul.f32 %v336, %v336
        %v344 = vrcp.pop %v343
        %v345 = vmul.f32 %v342, %v344
        %v346 = vsub.f32 %v345, 1.0
        %v347 = vsub.f32 %v346, %v278
        %v348 = vsel %vm238, %v347, 0.0
        %v349 = vsel %vm281, %v348, 0.0
        %350 = vadd.xlane.f32.xlu0 %v349
        %v351 = vpop.xlane.xlu0 %350
        %v352 = vrot.slane %v351, 4
        %v353 = vadd.f32 %v351, %v352
        %v354 = vrot.slane %v353, 2
        %v355 = vadd.f32 %v353, %v354
        %v356 = vrot.slane %v355, 1
        %v357 = vadd.f32 %v355, %v356
        %s358 = vtos %v357
        %v359 = vsel %vm239, %v347, 0.0
        %v360 = vsel %vm281, %v359, 0.0
        %361 = vadd.xlane.f32.xlu0 %v360
        %v362 = vpop.xlane.xlu0 %361
        %v363 = vrot.slane %v362, 4
        %v364 = vadd.f32 %v362, %v363
        %v365 = vrot.slane %v364, 2
        %v366 = vadd.f32 %v364, %v365
        %v367 = vrot.slane %v366, 1
        %v368 = vadd.f32 %v366, %v367
        %s369 = vtos %v368
        %s370 = sadd.s32 %s304, 1
      $region22: #{tpu_custom_call.1} parent=16 // loop_footer
        _
      $region23: #{tpu_custom_call.1} parent=16 // loop_footer_branch
        %303 = sbr.rel target = $region19
      $region24: #{tpu_custom_call.1} parent=16 // loop_exit
        _
      // While loop
      $region25: #{tpu_custom_call.1} parent=16 // loop_pre_header
        _
      $region26: #{tpu_custom_call.1} parent=16 // loop_header
        %s372 = sphi 0, %s451
        %s373 = sphi %s305, %s449
        %s374 = sphi %s306, %s450
        %s375 = sphi 0.0, %s428
        %s376 = sphi 0, %s452
        %p377 = scmp.eq.s32.totalorder %s376, 0
        %p378 = scmp.lt.s32.totalorder %s372, 1000
        %p379 = pnand %p377, %p378
        %p380 = pneg %p379
        %p381 = scmp.gt.f32.partialorder %s374, %s373
        %p382 = pnand %p380, %p381
        %p383 = pneg %p382
      $region27: #{tpu_custom_call.1} parent=16 // loop_header_branch
        %385 = sbr.rel (%p382) target = $region31
      $region28: #{tpu_custom_call.1} parent=16 // loop_body
        %s386 = ssub.f32 %s374, %s373
        %v387 = vstv %s386
        %v388 = vmul.f32 %v242, %v387
        %v389 = vstv %s373
        %v390 = vadd.f32 %v389, %v388
        %v391 = vsub.f32 %v231, %v390
        %v392 = vsub.f32 %v235, %v390
        %v393 = vmax.f32 %v391, 0.0
        %v394 = vmax.f32 %v392, 0.0
        %v395 = vadd.f32 %v393, %v394
        %396 = vadd.xlane.f32.xlu0 %v395
        %v397 = vpop.xlane.xlu0 %396
        %v398 = vmul.f32 %v393, %v393
        %v399 = vmul.f32 %v394, %v394
        %v400 = vadd.f32 %v398, %v399
        %401 = vadd.xlane.f32.xlu0 %v400
        %v402 = vpop.xlane.xlu0 %401
        %v403 = vmul.f32 %v402, 200.0
        %v404 = vmul.f32 %v397, %v397
        %v405 = vrcp.pop %v404
        %v406 = vmul.f32 %v403, %v405
        %v407 = vsub.f32 %v406, 1.0
        %v408 = vsub.f32 %v407, %v278
        %v409 = vand.u32 2147483647, %v408
        %vm410 = vcmp.le.f32.partialorder %v409, 0.0001
        %v411 = vsel %vm410, 1.0, 0.0
        %v412 = vrot.slane %v411, 4
        %v413 = vmax.f32 %v411, %v412
        %v414 = vrot.slane %v413, 2
        %v415 = vmax.f32 %v413, %v414
        %v416 = vrot.slane %v415, 1
        %v417 = vmax.f32 %v415, %v416
        %s418 = vtos %v417
        %p419 = scmp.gt.f32.partialorder %s418, 0.0
        %v420 = vsel %vm410, %v390, inf
        %v421 = vrot.slane %v420, 4
        %v422 = vmin.f32 %v420, %v421
        %v423 = vrot.slane %v422, 2
        %v424 = vmin.f32 %v422, %v423
        %v425 = vrot.slane %v424, 1
        %v426 = vmin.f32 %v424, %v425
        %s427 = vtos %v426
        %s428 = scalar_select %p419, %s427, %s375
        %vm429 = vcmp.lt.f32.partialorder %v408, 0.0
        %v430 = vsel %vm429, %v390, -inf
        %v431 = vrot.slane %v430, 4
        %v432 = vmax.f32 %v430, %v431
        %v433 = vrot.slane %v432, 2
        %v434 = vmax.f32 %v432, %v433
        %v435 = vrot.slane %v434, 1
        %v436 = vmax.f32 %v434, %v435
        %s437 = vtos %v436
        %s438 = smax.f32 %s373, %s437
        %vm439 = vcmp.gt.f32.partialorder %v408, 0.0
        %v440 = vsel %vm439, %v390, inf
        %v441 = vrot.slane %v440, 4
        %v442 = vmin.f32 %v440, %v441
        %v443 = vrot.slane %v442, 2
        %v444 = vmin.f32 %v442, %v443
        %v445 = vrot.slane %v444, 1
        %v446 = vmin.f32 %v444, %v445
        %s447 = vtos %v446
        %s448 = smin.f32 %s374, %s447
        %s449 = scalar_select %p419, %s373, %s438
        %s450 = scalar_select %p419, %s374, %s448
        %s451 = sadd.s32 %s372, 1
        %s452 = scalar_select %p419, 1, 0
      $region29: #{tpu_custom_call.1} parent=16 // loop_footer
        _
      $region30: #{tpu_custom_call.1} parent=16 // loop_footer_branch
        %371 = sbr.rel target = $region26
      $region31: #{tpu_custom_call.1} parent=16 // loop_exit
        _
      %p453 = scmp.eq.s32.totalorder %s376, 1
      %s454 = sadd.f32 %s373, %s374
      %s455 = smul.f32 %s454, 0.5
      %s456 = scalar_select %p453, %s375, %s455
      %v457 = vstv %s456
      %v458 = vsub.f32 %v41, %v457
      %v459 = vsub.f32 %v42, %v457
      %v460 = vmax.f32 %v458, 0.0
      %v461 = vmax.f32 %v459, 0.0
      %v462 = vsel %vm43, %v460, 0.0
      %v463 = vsel %vm43, %v461, 0.0
      %v464 = vadd.f32 %v462, %v463
      %465 = vadd.xlane.f32.xlu0 %v464
      %v466 = vpop.xlane.xlu0 %465
      %v467 = vrot.slane %v466, 4
      %v468 = vadd.f32 %v466, %v467
      %v469 = vrot.slane %v468, 2
      %v470 = vadd.f32 %v468, %v469
      %v471 = vrot.slane %v470, 1
      %v472 = vadd.f32 %v470, %v471
      %s473 = vtos %v472
      %v474 = vstv %s473
      %v475 = vrcp.pop %v474
      %s476 = vtos %v475
      %v477 = vstv %s476
      %v478 = vmul.f32 %v460, %v477
      %v479 = vmul.f32 %v461, %v477
      %v482 = vcombine.low %v478, %v479
      %v484 = vunpack.c.l.s4 1966171168
      %v485 = vunpack.c.0.s8 %v484
      %v486 = vlaneseq
      %v487 = vshrl.u32 %v486, 7
      %v488 = vsub.s32 %v485, %v487
      %v489 = vrot.slane %v482, %v488
      %v491 = vunpack.c.l.s4 1966171168
      %v492 = vunpack.c.0.s8 %v491
      %v493 = vlaneseq
      %v494 = vshrl.u32 %v493, 7
      %v495 = vsub.s32 %v492, %v494
      %v496 = vrot.slane %v489, %v495
      %498 = vst.msk [vmem:[#allocation7] sm:$0x3] %vm153, %v496
      %v499 = vmul.f32 %v460, %v34
      %v500 = vmul.f32 %v461, %v38
      %v501 = vsel %vm43, %v499, 0.0
      %v502 = vsel %vm43, %v500, 0.0
      %v503 = vadd.f32 %v501, %v502
      %504 = vadd.xlane.f32.xlu0 %v503
      %v505 = vpop.xlane.xlu0 %504
      %v506 = vrot.slane %v505, 4
      %v507 = vadd.f32 %v505, %v506
      %v508 = vrot.slane %v507, 2
      %v509 = vadd.f32 %v507, %v508
      %v510 = vrot.slane %v509, 1
      %v511 = vadd.f32 %v509, %v510
      %s512 = vtos %v511
      %s513 = smul.f32 %s512, %s476
      %514 = sst [smem:[%s155]] %s513
    $region17: #{tpu_custom_call.1} parent=1 // pred_fallthru
      _
    // Predicated region
    $region32: #{tpu_custom_call.1} parent=1 // pred_check
      _
    $region33: #{tpu_custom_call.1} parent=1 // pred_check_branch
      %516 = sbr.rel (0) target = $region35
    $region34: #{tpu_custom_call.1} parent=1 // pred_region
      %s518 = ssub.s32 16, 16
      %519 = vsyncadd [#allocation5], %s518
      %522 = dma.smem_to_hbm [#allocation6], 16, %s1, [#allocation5]
    $region35: #{tpu_custom_call.1} parent=1 // pred_fallthru
      _
    // Predicated region
    $region36: #{tpu_custom_call.1} parent=1 // pred_check
      _
    $region37: #{tpu_custom_call.1} parent=1 // pred_check_branch
      %524 = sbr.rel (0) target = $region39
    $region38: #{tpu_custom_call.1} parent=1 // pred_region
      %s526 = ssub.s32 32, 32
      %527 = vsyncadd [#allocation4], %s526
      %s529 = sshll.u32 [#allocation7], 4
      %s530 = int_to_ptr.vmem [resolvable:$true] %s529
      %532 = dma.vmem_to_hbm [thread:$0]  %s530, 32, %s2, [#allocation4]
    $region39: #{tpu_custom_call.1} parent=1 // pred_fallthru
      _
    // Predicated region
    $region40: #{tpu_custom_call.1} parent=1 // pred_check
      _
    $region41: #{tpu_custom_call.1} parent=1 // pred_check_branch
      %534 = sbr.rel (0) target = $region43
    $region42: #{tpu_custom_call.1} parent=1 // pred_region
      %535 = dma.done [#allocation5], 16
    $region43: #{tpu_custom_call.1} parent=1 // pred_fallthru
      _
    // Predicated region
    $region44: #{tpu_custom_call.1} parent=1 // pred_check
      _
    $region45: #{tpu_custom_call.1} parent=1 // pred_check_branch
      %537 = sbr.rel (0) target = $region47
    $region46: #{tpu_custom_call.1} parent=1 // pred_region
      %538 = dma.done [#allocation4], 32
    $region47: #{tpu_custom_call.1} parent=1 // pred_fallthru
      _
    %539 = sfence
    %540 = vsyncpa [#allocation3], 1
    %541 = vsyncpa [#allocation4], 1
    %542 = vsyncpa [#allocation5], 1

</llo_original>
